<compile_context>
chip_gen: v7x
topology: tpu7x:2x2x1
jax: 0.10.0
libtpu: 0.0.40
codegen_flags: <defaults>
</compile_context>

<pallas_src>
import jax
import jax.numpy as jnp
from jax.experimental import pallas as pl
from jax.experimental.pallas import tpu as pltpu

_LANE = 128
_SUB = 8
_NFEAT = 13


def _round_up(v, m):
    return ((v + m - 1) // m) * m


def _mlp_kernel(x_ref, w1_ref, w2_ref, misc_ref, o_ref):
    # misc rows: 0 -> b1 (64 real lanes), 1 -> b2 (32), 2 -> w3 column (32),
    #            3 -> b3 scalar at lane 0.
    x = x_ref[...]                                   # (bm, 13)
    b1 = misc_ref[0:1, :]                            # (1, 128)
    b2 = misc_ref[1:2, :]                            # (1, 128)
    w3 = misc_ref[2:3, :]                            # (1, 128)
    b3 = misc_ref[3:4, 0:1]                          # (1, 1)

    # Layer 1: (bm,13) @ (13,128) on the MXU (K=13, Mosaic pads internally).
    h = jnp.dot(x, w1_ref[...], preferred_element_type=jnp.float32) + b1
    h = jnp.maximum(h, 0.0)
    # TODO(synk): nn.Dropout(0.3) is identity in eval(); training-mode RNG mask not implemented.

    # Layer 2: (bm,128) @ (128,128); lanes >= 32 of the result stay exactly 0.
    h = jnp.dot(h, w2_ref[...], preferred_element_type=jnp.float32) + b2
    h = jnp.maximum(h, 0.0)

    # Layer 3 (single output unit): VPU multiply + cross-lane (XLU) reduction
    # instead of a 128-wide MXU matmul with 127 dead output lanes.
    z = jnp.sum(h * w3, axis=-1, keepdims=True) + b3   # (bm, 1)
    o_ref[...] = 1.0 / (1.0 + jnp.exp(-z))


def pack_params(params):
    """One-time packing of PyTorch-layout params into kernel-ready arrays."""
    w1, b1, w2, b2, w3, b3 = params
    w1p = jnp.zeros((_NFEAT, _LANE), jnp.float32).at[:, :64].set(
        w1.astype(jnp.float32))
    w2p = jnp.zeros((_LANE, _LANE), jnp.float32).at[:64, :32].set(
        w2.astype(jnp.float32))
    misc = jnp.zeros((4, _LANE), jnp.float32)
    misc = misc.at[0, :64].set(b1.astype(jnp.float32))
    misc = misc.at[1, :32].set(b2.astype(jnp.float32))
    misc = misc.at[2, :32].set(w3.astype(jnp.float32)[:, 0])
    misc = misc.at[3, 0].set(b3.astype(jnp.float32)[0])
    return w1p, w2p, misc


def heart_attack_classifier(x, packed_params, *, max_block_rows=1024):
    """Eval-mode forward of HeartAttackClassifier.  x: (B, 13) -> (B, 1)."""
    w1p, w2p, misc = packed_params
    b = x.shape[0]

    # Row tile: aim for >= 2 grid steps on large batches (v7x megacore),
    # single step for small batches, capped by max_block_rows.
    bm = min(max_block_rows, max(_SUB, _round_up(-(-b // 2), _SUB)))
    b_pad = _round_up(b, bm)
    grid = (b_pad // bm,)

    xf = x.astype(jnp.float32)
    if b_pad != b:
        xf = jnp.pad(xf, ((0, b_pad - b), (0, 0)))   # 13-wide rows: cheap

    out = pl.pallas_call(
        _mlp_kernel,
        out_shape=jax.ShapeDtypeStruct((b_pad, 1), jnp.float32),
        grid=grid,
        in_specs=[
            pl.BlockSpec((bm, _NFEAT), lambda i: (i, 0)),       # x rows, unpadded lanes
            pl.BlockSpec((_NFEAT, _LANE), lambda i: (0, 0)),    # W1 (13,128)
            pl.BlockSpec((_LANE, _LANE), lambda i: (0, 0)),     # W2 (128,128)
            pl.BlockSpec((4, _LANE), lambda i: (0, 0)),         # b1/b2/w3/b3 slab
        ],
        out_specs=pl.BlockSpec((bm, 1), lambda i: (i, 0)),
        compiler_params=pltpu.CompilerParams(
            dimension_semantics=("parallel",),
        ),
    )(xf, w1p, w2p, misc)

    return out[:b] if b_pad != b else out


def _reference(x, params):
    w1, b1, w2, b2, w3, b3 = params
    h = jnp.maximum(x @ w1 + b1, 0.0)
    h = jnp.maximum(h @ w2 + b2, 0.0)
    return jax.nn.sigmoid(h @ w3 + b3)


if __name__ == "__main__":
    key = jax.random.PRNGKey(0)
    ks = jax.random.split(key, 7)
    B = 2

    def _init(kw, kb, fan_in, fan_out):
        bound = 1.0 / (fan_in ** 0.5)
        w = jax.random.uniform(kw, (fan_in, fan_out), jnp.float32, -bound, bound)
        bias = jax.random.uniform(kb, (fan_out,), jnp.float32, -bound, bound)
        return w, bias

    w1, b1 = _init(ks[0], ks[1], 13, 64)
    w2, b2 = _init(ks[2], ks[3], 64, 32)
    w3, b3 = _init(ks[4], ks[5], 32, 1)
    x = jax.random.normal(ks[6], (B, 13), jnp.float32)
    params = (w1, b1, w2, b2, w3, b3)

    packed = pack_params(params)          # one-time parameter packing
    out = jax.block_until_ready(heart_attack_classifier(x, packed))

    ref = _reference(x, params)
    assert out.shape == (B, 1), out.shape
    assert jnp.allclose(out, ref, rtol=1e-4, atol=1e-5), (out, ref)
    print("KERNEL_OK")
</pallas_src>

<mosaic_0001>
module attributes {stable_mosaic.version = 11 : i64} {
  func.func @_mlp_kernel(%arg0: i32, %arg1: memref<8x13xf32, #tpu.memory_space<vmem>>, %arg2: memref<13x128xf32, #tpu.memory_space<vmem>>, %arg3: memref<128x128xf32, #tpu.memory_space<vmem>>, %arg4: memref<4x128xf32, #tpu.memory_space<vmem>>, %arg5: memref<8x1xf32, #tpu.memory_space<vmem>>) attributes {dimension_semantics = [#tpu.dimension_semantics<parallel>], iteration_bounds = array<i64: 1>, scalar_prefetch = 0 : i64, scratch_operands = 0 : i64, tpu.core_type = #tpu.core_type<tc>, window_params = [{transform_indices = @transform_0, window_bounds = array<i64: 8, 13>}, {pipeline_mode = #tpu.pipeline_mode<synchronous>, transform_indices = @transform_1, window_bounds = array<i64: 13, 128>}, {pipeline_mode = #tpu.pipeline_mode<synchronous>, transform_indices = @transform_2, window_bounds = array<i64: 128, 128>}, {pipeline_mode = #tpu.pipeline_mode<synchronous>, transform_indices = @transform_3, window_bounds = array<i64: 4, 128>}, {transform_indices = @transform_4, window_bounds = array<i64: 8, 1>}]} {
    %c0 = arith.constant 0 : index
    %c0_0 = arith.constant 0 : index
    %0 = vector.load %arg1[%c0, %c0_0] : memref<8x13xf32, #tpu.memory_space<vmem>>, vector<8x13xf32>
    %c0_1 = arith.constant 0 : index
    %c0_2 = arith.constant 0 : index
    %1 = vector.load %arg4[%c0_1, %c0_2] : memref<4x128xf32, #tpu.memory_space<vmem>>, vector<1x128xf32>
    %c1 = arith.constant 1 : index
    %c0_3 = arith.constant 0 : index
    %2 = vector.load %arg4[%c1, %c0_3] : memref<4x128xf32, #tpu.memory_space<vmem>>, vector<1x128xf32>
    %c2 = arith.constant 2 : index
    %c0_4 = arith.constant 0 : index
    %3 = vector.load %arg4[%c2, %c0_4] : memref<4x128xf32, #tpu.memory_space<vmem>>, vector<1x128xf32>
    %c3 = arith.constant 3 : index
    %c0_5 = arith.constant 0 : index
    %4 = vector.load %arg4[%c3, %c0_5] : memref<4x128xf32, #tpu.memory_space<vmem>>, vector<1x1xf32>
    %c0_6 = arith.constant 0 : index
    %c0_7 = arith.constant 0 : index
    %5 = vector.load %arg2[%c0_6, %c0_7] : memref<13x128xf32, #tpu.memory_space<vmem>>, vector<13x128xf32>
    %cst = arith.constant dense<0.000000e+00> : vector<8x128xf32>
    %6 = tpu.matmul %0, %5, %cst {dimension_numbers = #tpu.dot_dimension_numbers<[1], [0], [0], [1], [0, 0, 1, 1], [], []>} : vector<8x13xf32>, vector<13x128xf32>, vector<8x128xf32> -> vector<8x128xf32>
    %7 = vector.broadcast %1 : vector<1x128xf32> to vector<8x128xf32>
    %8 = arith.addf %6, %7 : vector<8x128xf32>
    %cst_8 = arith.constant 0.000000e+00 : f32
    %9 = vector.broadcast %cst_8 : f32 to vector<8x128xf32>
    %10 = arith.maximumf %8, %9 : vector<8x128xf32>
    %c0_9 = arith.constant 0 : index
    %c0_10 = arith.constant 0 : index
    %11 = vector.load %arg3[%c0_9, %c0_10] : memref<128x128xf32, #tpu.memory_space<vmem>>, vector<128x128xf32>
    %cst_11 = arith.constant dense<0.000000e+00> : vector<8x128xf32>
    %12 = tpu.matmul %10, %11, %cst_11 {dimension_numbers = #tpu.dot_dimension_numbers<[1], [0], [0], [1], [0, 0, 1, 1], [], []>} : vector<8x128xf32>, vector<128x128xf32>, vector<8x128xf32> -> vector<8x128xf32>
    %13 = vector.broadcast %2 : vector<1x128xf32> to vector<8x128xf32>
    %14 = arith.addf %12, %13 : vector<8x128xf32>
    %cst_12 = arith.constant 0.000000e+00 : f32
    %15 = vector.broadcast %cst_12 : f32 to vector<8x128xf32>
    %16 = arith.maximumf %14, %15 : vector<8x128xf32>
    %17 = vector.broadcast %3 : vector<1x128xf32> to vector<8x128xf32>
    %18 = arith.mulf %16, %17 : vector<8x128xf32>
    %cst_13 = arith.constant dense<0.000000e+00> : vector<8xf32>
    %19 = vector.multi_reduction <add>, %18, %cst_13 [1] : vector<8x128xf32> to vector<8xf32>
    %20 = vector.shape_cast %19 : vector<8xf32> to vector<8x1xf32>
    %21 = vector.broadcast %4 : vector<1x1xf32> to vector<8x1xf32>
    %22 = arith.addf %20, %21 : vector<8x1xf32>
    %cst_14 = arith.constant 0.000000e+00 : f32
    %23 = vector.broadcast %cst_14 : f32 to vector<8x1xf32>
    %24 = arith.subf %23, %22 : vector<8x1xf32>
    %25 = math.exp %24 : vector<8x1xf32>
    %cst_15 = arith.constant 1.000000e+00 : f32
    %26 = vector.broadcast %cst_15 : f32 to vector<8x1xf32>
    %27 = arith.addf %26, %25 : vector<8x1xf32>
    %cst_16 = arith.constant 1.000000e+00 : f32
    %28 = vector.broadcast %cst_16 : f32 to vector<8x1xf32>
    %29 = arith.divf %28, %27 : vector<8x1xf32>
    %c0_17 = arith.constant 0 : index
    %c0_18 = arith.constant 0 : index
    %30 = vector.load %arg5[%c0_17, %c0_18] : memref<8x1xf32, #tpu.memory_space<vmem>>, vector<8x1xf32>
    tpu.vector_store %arg5[%c0_17, %c0_18], %29 {strides = array<i32>} : memref<8x1xf32, #tpu.memory_space<vmem>>, vector<8x1xf32>,
    return
  }
  func.func @transform_0(%arg0: i32) -> (i32, i32) {
    %c0_i32 = arith.constant 0 : i32
    %c0_i32_0 = arith.constant 0 : i32
    return %arg0, %c0_i32 : i32, i32
  }
  func.func @transform_1(%arg0: i32) -> (i32, i32) {
    %c0_i32 = arith.constant 0 : i32
    %c0_i32_0 = arith.constant 0 : i32
    %c0_i32_1 = arith.constant 0 : i32
    return %c0_i32, %c0_i32_0 : i32, i32
  }
  func.func @transform_2(%arg0: i32) -> (i32, i32) {
    %c0_i32 = arith.constant 0 : i32
    %c0_i32_0 = arith.constant 0 : i32
    %c0_i32_1 = arith.constant 0 : i32
    return %c0_i32, %c0_i32_0 : i32, i32
  }
  func.func @transform_3(%arg0: i32) -> (i32, i32) {
    %c0_i32 = arith.constant 0 : i32
    %c0_i32_0 = arith.constant 0 : i32
    %c0_i32_1 = arith.constant 0 : i32
    return %c0_i32, %c0_i32_0 : i32, i32
  }
  func.func @transform_4(%arg0: i32) -> (i32, i32) {
    %c0_i32 = arith.constant 0 : i32
    %c0_i32_0 = arith.constant 0 : i32
    return %arg0, %c0_i32 : i32, i32
  }
}

</mosaic_0001>

<llo_original>
// kernel: tpu_custom_call.1
$region0: #{tpu_custom_call.1}
  #allocation0 [shape = 'u32[]', space=smem, size = 0x4, offset = 0x4, fixed_abs, tag = 'smem constant byte address 0x4 - core index']
  #allocation1 [shape = 'u32[144,128]{1,0:T(1,128)}', space=vmem, size = 0x12000, scoped, tag = 'internal scratch']
  %s0 = inlined_call_operand.hbm [shape: f32[8,13], index: 0, kind: input, shape index: {}]
  %s1 = inlined_call_operand.hbm [shape: f32[13,128], index: 1, kind: input, shape index: {}]
  %s2 = inlined_call_operand.hbm [shape: f32[128,128], index: 2, kind: input, shape index: {}]
  %s3 = inlined_call_operand.vmem [shape: f32[4,128], index: 3, kind: input, shape index: {}]
  %s4 = inlined_call_operand.vmem [shape: f32[8,1], index: 4, kind: output, shape index: {}]
  %s5 = sld [smem:[#allocation0]]
  $region38: #{tpu_custom_call.1} parent=0
    _
  %s7 = ssub.s32 1, %s5
  %s8 = scalar_select 0, %s7, %s5
  $region1: #{tpu_custom_call.1} parent=0
    #allocation2 [shape = 'u8[4096]{0}', space=vmem, size = 0x1000, scoped, tag = 'input window, operand 0, single buffered']
    #allocation3 [shape = 's32[1]{0}', space=sflag, size = 0x4, scoped, tag = 'scoped memory for tpu_custom_call.1']
    #allocation4 [shape = 'u8[8192]{0}', space=vmem, size = 0x2000, scoped, tag = 'input window, operand 1, single buffered']
    #allocation5 [shape = 's32[1]{0}', space=sflag, size = 0x4, scoped, tag = 'scoped memory for tpu_custom_call.1']
    #allocation6 [shape = 'u8[65536]{0}', space=vmem, size = 0x10000, scoped, tag = 'input window, operand 2, single buffered']
    %9 = vsyncpa [#allocation3], 0
    %10 = vsyncpa [#allocation5], 0
    // Predicated region
    $region2: #{tpu_custom_call.1} parent=1 // pred_check
      _
    $region3: #{tpu_custom_call.1} parent=1 // pred_check_branch
      %12 = sbr.rel (0) target = $region5
    $region4: #{tpu_custom_call.1} parent=1 // pred_region
      %s14 = ssub.s32 128, 128
      %15 = vsyncadd [#allocation3], %s14
      %s17 = sshll.u32 [#allocation2], 4
      %s18 = int_to_ptr.vmem [resolvable:$true] %s17
      %20 = dma.hbm_to_vmem [thread:$0]  %s0, 128, %s18, [#allocation3]
    $region5: #{tpu_custom_call.1} parent=1 // pred_fallthru
      _
    // Predicated region
    $region6: #{tpu_custom_call.1} parent=1 // pred_check
      _
    $region7: #{tpu_custom_call.1} parent=1 // pred_check_branch
      %22 = sbr.rel (0) target = $region9
    $region8: #{tpu_custom_call.1} parent=1 // pred_region
      %s24 = ssub.s32 256, 256
      %25 = vsyncadd [#allocation5], %s24
      %s26 = sshll.u32 [#allocation4], 4
      %s27 = int_to_ptr.vmem [resolvable:$true] %s26
      %32 = dma.hbm_to_vmem [thread:$0]  %s1, 256, %s27, [#allocation5], 128, 128, 8
    $region9: #{tpu_custom_call.1} parent=1 // pred_fallthru
      _
    // Predicated region
    $region10: #{tpu_custom_call.1} parent=1 // pred_check
      _
    $region11: #{tpu_custom_call.1} parent=1 // pred_check_branch
      %34 = sbr.rel (0) target = $region13
    $region12: #{tpu_custom_call.1} parent=1 // pred_region
      %s36 = ssub.s32 2048, 2048
      %37 = vsyncadd [#allocation5], %s36
      %s38 = sshll.u32 [#allocation6], 4
      %s39 = int_to_ptr.vmem [resolvable:$true] %s38
      %44 = dma.hbm_to_vmem [thread:$0]  %s2, 2048, %s39, [#allocation5], 128, 128, 8
    $region13: #{tpu_custom_call.1} parent=1 // pred_fallthru
      _
    // Predicated region
    $region14: #{tpu_custom_call.1} parent=1 // pred_check
      _
    $region15: #{tpu_custom_call.1} parent=1 // pred_check_branch
      %46 = sbr.rel (0) target = $region17
    $region16: #{tpu_custom_call.1} parent=1 // pred_region
      _
    $region17: #{tpu_custom_call.1} parent=1 // pred_fallthru
      _
    // Predicated region
    $region18: #{tpu_custom_call.1} parent=1 // pred_check
      _
    $region19: #{tpu_custom_call.1} parent=1 // pred_check_branch
      %48 = sbr.rel (0) target = $region21
    $region20: #{tpu_custom_call.1} parent=1 // pred_region
      %49 = dma.done [#allocation3], 128
    $region21: #{tpu_custom_call.1} parent=1 // pred_fallthru
      _
    // Predicated region
    $region22: #{tpu_custom_call.1} parent=1 // pred_check
      _
    $region23: #{tpu_custom_call.1} parent=1 // pred_check_branch
      %51 = sbr.rel (0) target = $region25
    $region24: #{tpu_custom_call.1} parent=1 // pred_region
      %52 = dma.done [#allocation5], 256
    $region25: #{tpu_custom_call.1} parent=1 // pred_fallthru
      _
    // Predicated region
    $region26: #{tpu_custom_call.1} parent=1 // pred_check
      _
    $region27: #{tpu_custom_call.1} parent=1 // pred_check_branch
      %54 = sbr.rel (0) target = $region29
    $region28: #{tpu_custom_call.1} parent=1 // pred_region
      %55 = dma.done [#allocation5], 2048
    $region29: #{tpu_custom_call.1} parent=1 // pred_fallthru
      _
    %v56 = vld [vmem:[#allocation2] sm:$0xff]
    %v57 = vld [vmem:[%s3] sm:$0x1]
    %v58 = vld [vmem:[%s3 + $0x1] sm:$0x1]
    %v59 = vld [vmem:[%s3 + $0x2] sm:$0x1]
    %v60 = vld [vmem:[%s3 + $0x3] sm:$0x1]
    %v61 = vld [vmem:[#allocation4] sm:$0xff]
    %v62 = vld [vmem:[#allocation4 + $0x8] sm:$0x1f]
    %v63 = vlaneseq
    %v64 = vshrl.u32 %v63, 7
    %v65 = vsub.s32 0, %v64
    %v66 = vrot.slane %v57, %v65
    %vm67 = vcmask 105472
    %v69 = vsel %vm67, %v56, 0
    %vm71 = vcmask 1044480
    %v73 = vsel %vm71, %v62, 0
    %75 = vmatprep.subr.mxu0 0.0
    %76 = vmatpush1.msra.mxu0 %v61
    %77 = vmatprep.subr.mxu0 0.0
    %78 = vmatpush1.msra.mxu0 %v73
    %79 = vmatprep.subr.mxu0 0.0
    %80 = vmatpush1.msra.mxu0 0.0
    %81 = vmatprep.subr.mxu0 0.0
    %82 = vmatpush1.msra.mxu0 0.0
    %83 = vmatprep.subr.mxu0 0.0
    %84 = vmatpush1.msra.mxu0 0.0
    %85 = vmatprep.subr.mxu0 0.0
    %86 = vmatpush1.msra.mxu0 0.0
    %87 = vmatprep.subr.mxu0 0.0
    %88 = vmatpush1.msra.mxu0 0.0
    %89 = vmatprep.subr.mxu0 0.0
    %90 = vmatpush1.msra.mxu0 0.0
    %91 = vmatprep.subr.mxu0 0.0
    %92 = vmatpush1.msra.mxu0 0.0
    %93 = vmatprep.subr.mxu0 0.0
    %94 = vmatpush1.msra.mxu0 0.0
    %95 = vmatprep.subr.mxu0 0.0
    %96 = vmatpush1.msra.mxu0 0.0
    %97 = vmatprep.subr.mxu0 0.0
    %98 = vmatpush1.msra.mxu0 0.0
    %99 = vmatprep.subr.mxu0 0.0
    %100 = vmatpush1.msra.mxu0 0.0
    %101 = vmatprep.subr.mxu0 0.0
    %102 = vmatpush1.msra.mxu0 0.0
    %103 = vmatprep.subr.mxu0 0.0
    %104 = vmatpush1.msra.mxu0 0.0
    %105 = vmatprep.subr.mxu0 0.0
    %106 = vmatpush1.msra.mxu0 0.0
    %107 = vmatprep.subr.mxu0 0.0
    %108 = vmatpush1.msra.mxu0 0.0
    %109 = vmatprep.subr.mxu0 0.0
    %110 = vmatpush1.msra.mxu0 0.0
    %111 = vmatprep.subr.mxu0 0.0
    %112 = vmatpush1.msra.mxu0 0.0
    %113 = vmatprep.subr.mxu0 0.0
    %114 = vmatpush1.msra.mxu0 0.0
    %115 = vmatprep.subr.mxu0 0.0
    %116 = vmatpush1.msra.mxu0 0.0
    %117 = vmatprep.subr.mxu0 0.0
    %118 = vmatpush1.msra.mxu0 0.0
    %119 = vmatprep.subr.mxu0 0.0
    %120 = vmatpush1.msra.mxu0 0.0
    %121 = vmatprep.subr.mxu0 0.0
    %122 = vmatpush1.msra.mxu0 0.0
    %123 = vmatprep.subr.mxu0 0.0
    %124 = vmatpush1.msra.mxu0 0.0
    %125 = vmatprep.subr.mxu0 0.0
    %126 = vmatpush1.msra.mxu0 0.0
    %127 = vmatprep.subr.mxu0 0.0
    %128 = vmatpush1.msra.mxu0 0.0
    %129 = vmatprep.subr.mxu0 0.0
    %130 = vmatpush1.msra.mxu0 0.0
    %131 = vmatprep.subr.mxu0 0.0
    %132 = vmatpush1.msra.mxu0 0.0
    %133 = vmatprep.subr.mxu0 0.0
    %134 = vmatpush1.msra.mxu0 0.0
    %135 = vmatprep.subr.mxu0 0.0
    %136 = vmatpush1.msra.mxu0 0.0
    %137 = vmatprep.subr.mxu0 0.0
    %138 = vmatpush1.msra.mxu0 0.0
    %139 = vmatprep.mubr.f32.mxu0 0.0
    %140 = vmatmul.mubr.f32.gmra.mrb[0].mxu0 %v69
    %v141 = vpop.f32.mrb[0].mxu0
    %v142 = vadd.f32 %v66, %v141
    %v143 = vpop.f32.mrb[0].mxu0
    %144 = vdwg.mxu0
    %v145 = vmax.f32 %v142, 0.0
    %v146 = vld [vmem:[#allocation6] sm:$0xff]
    %v147 = vld [vmem:[#allocation6 + $0x8] sm:$0xff]
    %v148 = vld [vmem:[#allocation6 + $0x10] sm:$0xff]
    %v149 = vld [vmem:[#allocation6 + $0x18] sm:$0xff]
    %v150 = vld [vmem:[#allocation6 + $0x20] sm:$0xff]
    %v151 = vld [vmem:[#allocation6 + $0x28] sm:$0xff]
    %v152 = vld [vmem:[#allocation6 + $0x30] sm:$0xff]
    %v153 = vld [vmem:[#allocation6 + $0x38] sm:$0xff]
    %v154 = vld [vmem:[#allocation6 + $0x40] sm:$0xff]
    %v155 = vld [vmem:[#allocation6 + $0x48] sm:$0xff]
    %v156 = vld [vmem:[#allocation6 + $0x50] sm:$0xff]
    %v157 = vld [vmem:[#allocation6 + $0x58] sm:$0xff]
    %v158 = vld [vmem:[#allocation6 + $0x60] sm:$0xff]
    %v159 = vld [vmem:[#allocation6 + $0x68] sm:$0xff]
    %v160 = vld [vmem:[#allocation6 + $0x70] sm:$0xff]
    %v161 = vld [vmem:[#allocation6 + $0x78] sm:$0xff]
    %v162 = vlaneseq
    %v163 = vshrl.u32 %v162, 7
    %v164 = vsub.s32 0, %v163
    %v165 = vrot.slane %v58, %v164
    %166 = vmatprep.subr.mxu0 0.0
    %167 = vmatpush1.msra.mxu0 %v146
    %168 = vmatprep.subr.mxu0 0.0
    %169 = vmatpush1.msra.mxu0 %v147
    %170 = vmatprep.subr.mxu0 0.0
    %171 = vmatpush1.msra.mxu0 %v148
    %172 = vmatprep.subr.mxu0 0.0
    %173 = vmatpush1.msra.mxu0 %v149
    %174 = vmatprep.subr.mxu0 0.0
    %175 = vmatpush1.msra.mxu0 %v150
    %176 = vmatprep.subr.mxu0 0.0
    %177 = vmatpush1.msra.mxu0 %v151
    %178 = vmatprep.subr.mxu0 0.0
    %179 = vmatpush1.msra.mxu0 %v152
    %180 = vmatprep.subr.mxu0 0.0
    %181 = vmatpush1.msra.mxu0 %v153
    %182 = vmatprep.subr.mxu0 0.0
    %183 = vmatpush1.msra.mxu0 %v154
    %184 = vmatprep.subr.mxu0 0.0
    %185 = vmatpush1.msra.mxu0 %v155
    %186 = vmatprep.subr.mxu0 0.0
    %187 = vmatpush1.msra.mxu0 %v156
    %188 = vmatprep.subr.mxu0 0.0
    %189 = vmatpush1.msra.mxu0 %v157
    %190 = vmatprep.subr.mxu0 0.0
    %191 = vmatpush1.msra.mxu0 %v158
    %192 = vmatprep.subr.mxu0 0.0
    %193 = vmatpush1.msra.mxu0 %v159
    %194 = vmatprep.subr.mxu0 0.0
    %195 = vmatpush1.msra.mxu0 %v160
    %196 = vmatprep.subr.mxu0 0.0
    %197 = vmatpush1.msra.mxu0 %v161
    %198 = vmatprep.subr.mxu0 0.0
    %199 = vmatpush1.msra.mxu0 0.0
    %200 = vmatprep.subr.mxu0 0.0
    %201 = vmatpush1.msra.mxu0 0.0
    %202 = vmatprep.subr.mxu0 0.0
    %203 = vmatpush1.msra.mxu0 0.0
    %204 = vmatprep.subr.mxu0 0.0
    %205 = vmatpush1.msra.mxu0 0.0
    %206 = vmatprep.subr.mxu0 0.0
    %207 = vmatpush1.msra.mxu0 0.0
    %208 = vmatprep.subr.mxu0 0.0
    %209 = vmatpush1.msra.mxu0 0.0
    %210 = vmatprep.subr.mxu0 0.0
    %211 = vmatpush1.msra.mxu0 0.0
    %212 = vmatprep.subr.mxu0 0.0
    %213 = vmatpush1.msra.mxu0 0.0
    %214 = vmatprep.subr.mxu0 0.0
    %215 = vmatpush1.msra.mxu0 0.0
    %216 = vmatprep.subr.mxu0 0.0
    %217 = vmatpush1.msra.mxu0 0.0
    %218 = vmatprep.subr.mxu0 0.0
    %219 = vmatpush1.msra.mxu0 0.0
    %220 = vmatprep.subr.mxu0 0.0
    %221 = vmatpush1.msra.mxu0 0.0
    %222 = vmatprep.subr.mxu0 0.0
    %223 = vmatpush1.msra.mxu0 0.0
    %224 = vmatprep.subr.mxu0 0.0
    %225 = vmatpush1.msra.mxu0 0.0
    %226 = vmatprep.subr.mxu0 0.0
    %227 = vmatpush1.msra.mxu0 0.0
    %228 = vmatprep.subr.mxu0 0.0
    %229 = vmatpush1.msra.mxu0 0.0
    %230 = vmatprep.mubr.f32.mxu0 0.0
    %231 = vmatmul.mubr.f32.gmra.mrb[0].mxu0 %v145
    %v232 = vpop.f32.mrb[0].mxu0
    %v233 = vadd.f32 %v165, %v232
    %v234 = vpop.f32.mrb[0].mxu0
    %235 = vdwg.mxu0
    %v236 = vmax.f32 %v233, 0.0
    %v237 = vlaneseq
    %v238 = vshrl.u32 %v237, 7
    %v239 = vsub.s32 0, %v238
    %v240 = vrot.slane %v59, %v239
    %v241 = vmul.f32 %v236, %v240
    %242 = vadd.xlane.f32.xlu0 %v241
    %v243 = vpop.xlane.xlu0 %242
    %v244 = vlaneseq
    %v245 = vshrl.u32 %v244, 7
    %v246 = vsub.s32 0, %v245
    %v247 = vrot.slane %v60, %v246
    %v248 = vadd.f32 %v243, %v247
    %v249 = vsub.f32 0.0, %v248
    %v250 = vmul.f32 %v249, 1.442695
    %v251 = vpow.pop %v250
    %v252 = vadd.f32 %v251, 1.0
    %v253 = vrcp.pop %v252
    %v254 = vmul.f32 1.0, %v253
    %vm255 = vcmask 7168
    %256 = vst.msk [vmem:[%s4] sm:$0xff] %vm255, %v254
    // Predicated region
    $region30: #{tpu_custom_call.1} parent=1 // pred_check
      _
    $region31: #{tpu_custom_call.1} parent=1 // pred_check_branch
      %258 = sbr.rel (0) target = $region33
    $region32: #{tpu_custom_call.1} parent=1 // pred_region
      _
    $region33: #{tpu_custom_call.1} parent=1 // pred_fallthru
      _
    // Predicated region
    $region34: #{tpu_custom_call.1} parent=1 // pred_check
      _
    $region35: #{tpu_custom_call.1} parent=1 // pred_check_branch
      %260 = sbr.rel (0) target = $region37
    $region36: #{tpu_custom_call.1} parent=1 // pred_region
      _
    $region37: #{tpu_custom_call.1} parent=1 // pred_fallthru
      _
    %261 = vsyncpa [#allocation3], 1
    %262 = vsyncpa [#allocation5], 1

</llo_original>
